<compile_context>
chip_gen: v5e
topology: v5e:2x2
jax: 0.10.0
libtpu: 0.0.40
codegen_flags: <defaults>
</compile_context>

<pallas_src>
import functools

import jax
import jax.numpy as jnp
from jax.experimental import pallas as pl
from jax.experimental.pallas import tpu as pltpu

N_IN = 784     # input features
HIDDEN = 200   # real hidden width (only used for parameter shapes)
N_OUT = 10     # real number of classes
NP = 128       # classes padded to one full lane group -> lane-dense stores


def _round_up(a, m):
    return (a + m - 1) // m * m


def _cdiv(a, b):
    return (a + b - 1) // b


def softmaxnet_kernel(x_ref, w_ref, b_ref, o_ref):
    # In-kernel f32 -> bf16 cast of the streamed activation (hidden under DMA);
    # MXU matmul accumulates in f32.
    x = x_ref[...].astype(jnp.bfloat16)
    logits = jnp.dot(x, w_ref[...], preferred_element_type=jnp.float32)
    logits = logits + b_ref[...]

    # log_softmax over the 10 real classes. Padded lanes are masked to -inf once:
    # exp(-inf) = 0, so no second select is needed. Padded output lanes hold -inf
    # garbage; the wrapper slices [:, :10].
    lane = jax.lax.broadcasted_iota(jnp.int32, logits.shape, 1)
    masked = jnp.where(lane < N_OUT, logits, -jnp.inf)
    m = jnp.max(masked, axis=-1, keepdims=True)
    shifted = masked - m
    lse = jnp.log(jnp.sum(jnp.exp(shifted), axis=-1, keepdims=True))
    o_ref[...] = (shifted - lse).astype(o_ref.dtype)


@functools.partial(jax.jit, static_argnames=("max_tb", "min_steps"))
def softmaxnet_forward(x, w1, b1, w2, b2, *, max_tb=1024, min_steps=8):
    """x: (B, 784) f32. w1: (784, 200), b1: (1, 200), w2: (200, 10), b2: (1, 10)."""
    B = x.shape[0]

    # The module applies fc2(fc1(x)) with no activation in between, so the
    # composition is a single affine map. Fuse in f32 (tiny 784x200 @ 200x10
    # matmul), then pad classes 10->128 and quantize the fused weight to bf16.
    wf = jnp.pad(w1 @ w2, ((0, 0), (0, NP - N_OUT))).astype(jnp.bfloat16)      # (784, 128)
    bf = jnp.pad(b1 @ w2 + b2, ((0, 0), (0, NP - N_OUT))).astype(jnp.float32)  # (1, 128)

    # Batch tile: aim for >= min_steps grid steps (megacore + pipelining), keep it
    # a multiple of 16 (bf16 output sublane packing), never larger than the batch
    # or max_tb. Tiny batches (< 16 rows) use a single full-batch tile.
    if B >= 16:
        tb = min(max_tb, _round_up(_cdiv(B, min_steps), 16))
        tb = min(tb, (B // 16) * 16)
    else:
        tb = B
    grid = (_cdiv(B, tb),)  # ragged tail handled by Pallas boundary clipping

    cost = pl.CostEstimate(
        flops=2 * B * N_IN * NP,
        transcendentals=B * NP,
        bytes_accessed=x.size * 4 + wf.size * 2 + bf.size * 4 + B * NP * 2,
    )

    out = pl.pallas_call(
        softmaxnet_kernel,
        # bf16 writeback halves output HBM bytes; caller slices + casts back.
        out_shape=jax.ShapeDtypeStruct((B, NP), jnp.bfloat16),
        grid_spec=pltpu.PrefetchScalarGridSpec(
            num_scalar_prefetch=0,
            grid=grid,
            in_specs=[
                pl.BlockSpec((tb, N_IN), lambda i: (i, 0)),  # x streams (f32), auto double-buffered
                pl.BlockSpec((N_IN, NP), lambda i: (0, 0)),  # fused weight stays VMEM-resident
                pl.BlockSpec((1, NP), lambda i: (0, 0)),     # fused bias stays VMEM-resident
            ],
            out_specs=pl.BlockSpec((tb, NP), lambda i: (i, 0)),
        ),
        compiler_params=pltpu.CompilerParams(
            dimension_semantics=("parallel",),   # v7x megacore shards the batch axis
        ),
        cost_estimate=cost,
    )(x, wf, bf)

    # Real classes only; back to f32 to match the PyTorch module's output dtype.
    return out[:B, :N_OUT].astype(jnp.float32)


def init_params(key):
    # Deterministic synthetic params mimicking nn.Linear init ranges.
    k1, k2, k3, k4 = jax.random.split(key, 4)
    lim1 = 1.0 / jnp.sqrt(784.0)
    lim2 = 1.0 / jnp.sqrt(200.0)
    # Stored as (in_features, out_features) -- transpose of PyTorch's (out, in).
    w1 = jax.random.uniform(k1, (N_IN, HIDDEN), jnp.float32, -lim1, lim1)
    b1 = jax.random.uniform(k2, (1, HIDDEN), jnp.float32, -lim1, lim1)
    w2 = jax.random.uniform(k3, (HIDDEN, N_OUT), jnp.float32, -lim2, lim2)
    b2 = jax.random.uniform(k4, (1, N_OUT), jnp.float32, -lim2, lim2)
    return w1, b1, w2, b2


if __name__ == "__main__":
    key = jax.random.PRNGKey(0)
    kx, kp = jax.random.split(key)
    B = 8
    x = jax.random.normal(kx, (B, N_IN), jnp.float32)
    w1, b1, w2, b2 = init_params(kp)

    out = softmaxnet_forward(x, w1, b1, w2, b2)
    out = jax.block_until_ready(out)
    assert out.shape == (B, N_OUT)

    # Pure-f32 reference matching the PyTorch forward: log_softmax(fc2(fc1(x))).
    ref = jax.nn.log_softmax((x @ w1 + b1) @ w2 + b2, axis=-1)
    max_err = float(jnp.max(jnp.abs(out - ref)))
    assert jnp.allclose(out, ref, atol=3e-2, rtol=3e-2), max_err

    # Rows of log-probs must exp-sum to 1.
    assert jnp.allclose(jnp.sum(jnp.exp(out), axis=-1), 1.0, atol=1e-2)

    print("KERNEL_OK")
</pallas_src>

<mosaic_0001>
module attributes {stable_mosaic.version = 11 : i64} {
  func.func @softmaxnet_kernel(%arg0: i32, %arg1: memref<8x784xf32, #tpu.memory_space<vmem>>, %arg2: memref<784x128xbf16, #tpu.memory_space<vmem>>, %arg3: memref<1x128xf32, #tpu.memory_space<vmem>>, %arg4: memref<8x128xbf16, #tpu.memory_space<vmem>>) attributes {dimension_semantics = [#tpu.dimension_semantics<parallel>], iteration_bounds = array<i64: 1>, scalar_prefetch = 0 : i64, scratch_operands = 0 : i64, tpu.core_type = #tpu.core_type<tc>, window_params = [{transform_indices = @transform_0, window_bounds = array<i64: 8, 784>}, {pipeline_mode = #tpu.pipeline_mode<synchronous>, transform_indices = @transform_1, window_bounds = array<i64: 784, 128>}, {pipeline_mode = #tpu.pipeline_mode<synchronous>, transform_indices = @transform_2, window_bounds = array<i64: 1, 128>}, {transform_indices = @transform_3, window_bounds = array<i64: 8, 128>}]} {
    %c0 = arith.constant 0 : index
    %c0_0 = arith.constant 0 : index
    %0 = vector.load %arg1[%c0, %c0_0] : memref<8x784xf32, #tpu.memory_space<vmem>>, vector<8x784xf32>
    %1 = arith.truncf %0 : vector<8x784xf32> to vector<8x784xbf16>
    %c0_1 = arith.constant 0 : index
    %c0_2 = arith.constant 0 : index
    %2 = vector.load %arg2[%c0_1, %c0_2] : memref<784x128xbf16, #tpu.memory_space<vmem>>, vector<784x128xbf16>
    %cst = arith.constant dense<0.000000e+00> : vector<8x128xf32>
    %3 = tpu.matmul %1, %2, %cst {dimension_numbers = #tpu.dot_dimension_numbers<[1], [0], [0], [1], [0, 0, 1, 1], [], []>} : vector<8x784xbf16>, vector<784x128xbf16>, vector<8x128xf32> -> vector<8x128xf32>
    %c0_3 = arith.constant 0 : index
    %c0_4 = arith.constant 0 : index
    %4 = vector.load %arg3[%c0_3, %c0_4] : memref<1x128xf32, #tpu.memory_space<vmem>>, vector<1x128xf32>
    %5 = vector.broadcast %4 : vector<1x128xf32> to vector<8x128xf32>
    %6 = arith.addf %3, %5 : vector<8x128xf32>
    %7 = tpu.iota {dimensions = array<i32: 1>} : vector<8x128xi32>
    %c10_i32 = arith.constant 10 : i32
    %8 = vector.broadcast %c10_i32 : i32 to vector<8x128xi32>
    %9 = arith.cmpi slt, %7, %8 : vector<8x128xi32>
    %cst_5 = arith.constant 0xFF800000 : f32
    %10 = vector.broadcast %cst_5 : f32 to vector<8x128xf32>
    %11 = arith.select %9, %6, %10 : vector<8x128xi1>, vector<8x128xf32>
    %cst_6 = arith.constant dense<0xFF800000> : vector<8xf32>
    %12 = vector.multi_reduction <maximumf>, %11, %cst_6 [1] : vector<8x128xf32> to vector<8xf32>
    %13 = vector.shape_cast %12 : vector<8xf32> to vector<8x1xf32>
    %14 = vector.broadcast %13 : vector<8x1xf32> to vector<8x128xf32>
    %15 = arith.subf %11, %14 : vector<8x128xf32>
    %16 = math.exp %15 : vector<8x128xf32>
    %cst_7 = arith.constant dense<0.000000e+00> : vector<8xf32>
    %17 = vector.multi_reduction <add>, %16, %cst_7 [1] : vector<8x128xf32> to vector<8xf32>
    %18 = vector.shape_cast %17 : vector<8xf32> to vector<8x1xf32>
    %19 = math.log %18 : vector<8x1xf32>
    %20 = vector.broadcast %19 : vector<8x1xf32> to vector<8x128xf32>
    %21 = arith.subf %15, %20 : vector<8x128xf32>
    %22 = arith.truncf %21 : vector<8x128xf32> to vector<8x128xbf16>
    %c0_8 = arith.constant 0 : index
    %c0_9 = arith.constant 0 : index
    %23 = vector.load %arg4[%c0_8, %c0_9] : memref<8x128xbf16, #tpu.memory_space<vmem>>, vector<8x128xbf16>
    tpu.vector_store %arg4[%c0_8, %c0_9], %22 {strides = array<i32>} : memref<8x128xbf16, #tpu.memory_space<vmem>>, vector<8x128xbf16>,
    return
  }
  func.func @transform_0(%arg0: i32) -> (i32, i32) {
    %c0_i32 = arith.constant 0 : i32
    %c0_i32_0 = arith.constant 0 : i32
    return %arg0, %c0_i32 : i32, i32
  }
  func.func @transform_1(%arg0: i32) -> (i32, i32) {
    %c0_i32 = arith.constant 0 : i32
    %c0_i32_0 = arith.constant 0 : i32
    %c0_i32_1 = arith.constant 0 : i32
    return %c0_i32, %c0_i32_0 : i32, i32
  }
  func.func @transform_2(%arg0: i32) -> (i32, i32) {
    %c0_i32 = arith.constant 0 : i32
    %c0_i32_0 = arith.constant 0 : i32
    %c0_i32_1 = arith.constant 0 : i32
    return %c0_i32, %c0_i32_0 : i32, i32
  }
  func.func @transform_3(%arg0: i32) -> (i32, i32) {
    %c0_i32 = arith.constant 0 : i32
    %c0_i32_0 = arith.constant 0 : i32
    return %arg0, %c0_i32 : i32, i32
  }
}

</mosaic_0001>

<llo_original>
// kernel: softmaxnet_forward.1
$region0: #{softmaxnet_forward.1}
  #allocation0 [shape = 'u32[]', space=smem, size = 0x4, offset = 0x4, fixed_abs, tag = 'smem constant byte address 0x4 - core index']
  #allocation1 [shape = 'u32[72,128]{1,0:T(1,128)}', space=vmem, size = 0x9000, scoped, tag = 'internal scratch']
  %s0 = inlined_call_operand.vmem [shape: f32[8,784], index: 0, kind: input, shape index: {}]
  %s1 = inlined_call_operand.vmem [shape: bf16[784,128], index: 1, kind: input, shape index: {}]
  %s2 = inlined_call_operand.vmem [shape: f32[1,128], index: 2, kind: input, shape index: {}]
  %s3 = inlined_call_operand.vmem [shape: bf16[8,128], index: 3, kind: output, shape index: {}]
  %s4 = sld [smem:[#allocation0]]
  $region22: #{softmaxnet_forward.1} parent=0
    _
  %s6 = ssub.s32 1, %s4
  %s7 = scalar_select 0, %s6, %s4
  // Predicated region
  $region2: #{softmaxnet_forward.1} parent=0 // pred_check
    _
  $region3: #{softmaxnet_forward.1} parent=0 // pred_check_branch
    %9 = sbr.rel (0) target = $region5
  $region4: #{softmaxnet_forward.1} parent=0 // pred_region
    _
  $region5: #{softmaxnet_forward.1} parent=0 // pred_fallthru
    _
  // Predicated region
  $region6: #{softmaxnet_forward.1} parent=0 // pred_check
    _
  $region7: #{softmaxnet_forward.1} parent=0 // pred_check_branch
    %11 = sbr.rel (0) target = $region9
  $region8: #{softmaxnet_forward.1} parent=0 // pred_region
    _
  $region9: #{softmaxnet_forward.1} parent=0 // pred_fallthru
    _
  // Predicated region
  $region10: #{softmaxnet_forward.1} parent=0 // pred_check
    _
  $region11: #{softmaxnet_forward.1} parent=0 // pred_check_branch
    %13 = sbr.rel (0) target = $region13
  $region12: #{softmaxnet_forward.1} parent=0 // pred_region
    _
  $region13: #{softmaxnet_forward.1} parent=0 // pred_fallthru
    _
  %v15 = vld [vmem:[%s0] sm:$0xff]
  %v16 = vld [vmem:[%s0 + $0x8] sm:$0xff]
  %v17 = vld [vmem:[%s0 + $0x10] sm:$0xff]
  %v18 = vld [vmem:[%s0 + $0x18] sm:$0xff]
  %v19 = vld [vmem:[%s0 + $0x20] sm:$0xff]
  %v20 = vld [vmem:[%s0 + $0x28] sm:$0xff]
  %v21 = vld [vmem:[%s0 + $0x30] sm:$0xff]
  %v22 = vpack.c.bf16 %v15, %v15
  %v23 = vpack.c.bf16 %v16, %v16
  %v24 = vpack.c.bf16 %v17, %v17
  %v25 = vpack.c.bf16 %v18, %v18
  %v26 = vpack.c.bf16 %v19, %v19
  %v27 = vpack.c.bf16 %v20, %v20
  %v28 = vpack.c.bf16 %v21, %v21
  %v29 = vld [vmem:[%s1] sm:$0xf]
  %v30 = vld [vmem:[%s1 + $0x4] sm:$0xf]
  %v31 = vld [vmem:[%s1 + $0x8] sm:$0xf]
  %v32 = vld [vmem:[%s1 + $0xc] sm:$0xf]
  %v33 = vld [vmem:[%s1 + $0x10] sm:$0xf]
  %v34 = vld [vmem:[%s1 + $0x14] sm:$0xf]
  %v35 = vld [vmem:[%s1 + $0x18] sm:$0xf]
  %v36 = vld [vmem:[%s1 + $0x1c] sm:$0xf]
  %v37 = vld [vmem:[%s1 + $0x20] sm:$0xf]
  %v38 = vld [vmem:[%s1 + $0x24] sm:$0xf]
  %v39 = vld [vmem:[%s1 + $0x28] sm:$0xf]
  %v40 = vld [vmem:[%s1 + $0x2c] sm:$0xf]
  %v41 = vld [vmem:[%s1 + $0x30] sm:$0xf]
  %v42 = vld [vmem:[%s1 + $0x34] sm:$0xf]
  %v43 = vld [vmem:[%s1 + $0x38] sm:$0xf]
  %v44 = vld [vmem:[%s1 + $0x3c] sm:$0xf]
  %v45 = vld [vmem:[%s1 + $0x40] sm:$0xf]
  %v46 = vld [vmem:[%s1 + $0x44] sm:$0xf]
  %v47 = vld [vmem:[%s1 + $0x48] sm:$0xf]
  %v48 = vld [vmem:[%s1 + $0x4c] sm:$0xf]
  %v49 = vld [vmem:[%s1 + $0x50] sm:$0xf]
  %v50 = vld [vmem:[%s1 + $0x54] sm:$0xf]
  %v51 = vld [vmem:[%s1 + $0x58] sm:$0xf]
  %v52 = vld [vmem:[%s1 + $0x5c] sm:$0xf]
  %v53 = vld [vmem:[%s1 + $0x60] sm:$0xf]
  %v54 = vld [vmem:[%s1 + $0x64] sm:$0xf]
  %v55 = vld [vmem:[%s1 + $0x68] sm:$0xf]
  %v56 = vld [vmem:[%s1 + $0x6c] sm:$0xf]
  %v57 = vld [vmem:[%s1 + $0x70] sm:$0xf]
  %v58 = vld [vmem:[%s1 + $0x74] sm:$0xf]
  %v59 = vld [vmem:[%s1 + $0x78] sm:$0xf]
  %v60 = vld [vmem:[%s1 + $0x7c] sm:$0xf]
  %v61 = vld [vmem:[%s1 + $0x80] sm:$0xf]
  %v62 = vld [vmem:[%s1 + $0x84] sm:$0xf]
  %v63 = vld [vmem:[%s1 + $0x88] sm:$0xf]
  %v64 = vld [vmem:[%s1 + $0x8c] sm:$0xf]
  %v65 = vld [vmem:[%s1 + $0x90] sm:$0xf]
  %v66 = vld [vmem:[%s1 + $0x94] sm:$0xf]
  %v67 = vld [vmem:[%s1 + $0x98] sm:$0xf]
  %v68 = vld [vmem:[%s1 + $0x9c] sm:$0xf]
  %v69 = vld [vmem:[%s1 + $0xa0] sm:$0xf]
  %v70 = vld [vmem:[%s1 + $0xa4] sm:$0xf]
  %v71 = vld [vmem:[%s1 + $0xa8] sm:$0xf]
  %v72 = vld [vmem:[%s1 + $0xac] sm:$0xf]
  %v73 = vld [vmem:[%s1 + $0xb0] sm:$0xf]
  %v74 = vld [vmem:[%s1 + $0xb4] sm:$0xf]
  %v75 = vld [vmem:[%s1 + $0xb8] sm:$0xf]
  %v76 = vld [vmem:[%s1 + $0xbc] sm:$0xf]
  %v77 = vld [vmem:[%s1 + $0xc0] sm:$0xf]
  %v78 = vld [vmem:[%s1 + $0xc4] sm:$0xf]
  %v79 = vld [vmem:[%s1 + $0xc8] sm:$0xf]
  %v80 = vld [vmem:[%s1 + $0xcc] sm:$0xf]
  %v81 = vld [vmem:[%s1 + $0xd0] sm:$0xf]
  %v82 = vld [vmem:[%s1 + $0xd4] sm:$0xf]
  %v83 = vld [vmem:[%s1 + $0xd8] sm:$0xf]
  %v84 = vld [vmem:[%s1 + $0xdc] sm:$0xf]
  %v85 = vld [vmem:[%s1 + $0xe0] sm:$0xf]
  %v86 = vld [vmem:[%s1 + $0xe4] sm:$0xf]
  %v87 = vld [vmem:[%s1 + $0xe8] sm:$0xf]
  %v88 = vld [vmem:[%s1 + $0xec] sm:$0xf]
  %v89 = vld [vmem:[%s1 + $0xf0] sm:$0xf]
  %v90 = vld [vmem:[%s1 + $0xf4] sm:$0xf]
  %v91 = vld [vmem:[%s1 + $0xf8] sm:$0xf]
  %v92 = vld [vmem:[%s1 + $0xfc] sm:$0xf]
  %v93 = vld [vmem:[%s1 + $0x100] sm:$0xf]
  %v94 = vld [vmem:[%s1 + $0x104] sm:$0xf]
  %v95 = vld [vmem:[%s1 + $0x108] sm:$0xf]
  %v96 = vld [vmem:[%s1 + $0x10c] sm:$0xf]
  %v97 = vld [vmem:[%s1 + $0x110] sm:$0xf]
  %v98 = vld [vmem:[%s1 + $0x114] sm:$0xf]
  %v99 = vld [vmem:[%s1 + $0x118] sm:$0xf]
  %v100 = vld [vmem:[%s1 + $0x11c] sm:$0xf]
  %v101 = vld [vmem:[%s1 + $0x120] sm:$0xf]
  %v102 = vld [vmem:[%s1 + $0x124] sm:$0xf]
  %v103 = vld [vmem:[%s1 + $0x128] sm:$0xf]
  %v104 = vld [vmem:[%s1 + $0x12c] sm:$0xf]
  %v105 = vld [vmem:[%s1 + $0x130] sm:$0xf]
  %v106 = vld [vmem:[%s1 + $0x134] sm:$0xf]
  %v107 = vld [vmem:[%s1 + $0x138] sm:$0xf]
  %v108 = vld [vmem:[%s1 + $0x13c] sm:$0xf]
  %v109 = vld [vmem:[%s1 + $0x140] sm:$0xf]
  %v110 = vld [vmem:[%s1 + $0x144] sm:$0xf]
  %v111 = vld [vmem:[%s1 + $0x148] sm:$0xf]
  %v112 = vld [vmem:[%s1 + $0x14c] sm:$0xf]
  %v113 = vld [vmem:[%s1 + $0x150] sm:$0xf]
  %v114 = vld [vmem:[%s1 + $0x154] sm:$0xf]
  %v115 = vld [vmem:[%s1 + $0x158] sm:$0xf]
  %v116 = vld [vmem:[%s1 + $0x15c] sm:$0xf]
  %v117 = vld [vmem:[%s1 + $0x160] sm:$0xf]
  %v118 = vld [vmem:[%s1 + $0x164] sm:$0xf]
  %v119 = vld [vmem:[%s1 + $0x168] sm:$0xf]
  %v120 = vld [vmem:[%s1 + $0x16c] sm:$0xf]
  %v121 = vld [vmem:[%s1 + $0x170] sm:$0xf]
  %v122 = vld [vmem:[%s1 + $0x174] sm:$0xf]
  %v123 = vld [vmem:[%s1 + $0x178] sm:$0xf]
  %v124 = vld [vmem:[%s1 + $0x17c] sm:$0xf]
  %v125 = vld [vmem:[%s1 + $0x180] sm:$0xf]
  %v126 = vld [vmem:[%s1 + $0x184] sm:$0xf]
  %v127 = vld [vmem:[%s2] sm:$0x1]
  %v129 = vperm.slane %v127, 0
  %v229 = vunpack.c.l.b16 %v29
  %v230 = vunpack.c.l.b16 %v30
  %v231 = vunpack.c.l.b16 %v31
  %v232 = vunpack.c.l.b16 %v32
  %v233 = vunpack.c.l.b16 %v33
  %v234 = vunpack.c.l.b16 %v34
  %v235 = vunpack.c.l.b16 %v35
  %v236 = vunpack.c.l.b16 %v36
  %v237 = vunpack.c.l.b16 %v37
  %v238 = vunpack.c.l.b16 %v38
  %v239 = vunpack.c.l.b16 %v39
  %v240 = vunpack.c.l.b16 %v40
  %v241 = vunpack.c.l.b16 %v41
  %v242 = vunpack.c.l.b16 %v42
  %v243 = vunpack.c.l.b16 %v43
  %v244 = vunpack.c.l.b16 %v44
  %v245 = vunpack.c.l.b16 %v45
  %v246 = vunpack.c.l.b16 %v46
  %v247 = vunpack.c.l.b16 %v47
  %v248 = vunpack.c.l.b16 %v48
  %v249 = vunpack.c.l.b16 %v49
  %v250 = vunpack.c.l.b16 %v50
  %v251 = vunpack.c.l.b16 %v51
  %v252 = vunpack.c.l.b16 %v52
  %v253 = vunpack.c.l.b16 %v53
  %v254 = vunpack.c.l.b16 %v54
  %v255 = vunpack.c.l.b16 %v55
  %v256 = vunpack.c.l.b16 %v56
  %v257 = vunpack.c.l.b16 %v57
  %v258 = vunpack.c.l.b16 %v58
  %v259 = vunpack.c.l.b16 %v59
  %v260 = vunpack.c.l.b16 %v60
  %v261 = vunpack.c.l.b16 %v61
  %v262 = vunpack.c.l.b16 %v62
  %v263 = vunpack.c.l.b16 %v63
  %v264 = vunpack.c.l.b16 %v64
  %v265 = vunpack.c.l.b16 %v65
  %v266 = vunpack.c.l.b16 %v66
  %v267 = vunpack.c.l.b16 %v67
  %v268 = vunpack.c.l.b16 %v68
  %v269 = vunpack.c.l.b16 %v69
  %v270 = vunpack.c.l.b16 %v70
  %v271 = vunpack.c.l.b16 %v71
  %v272 = vunpack.c.l.b16 %v72
  %v273 = vunpack.c.l.b16 %v73
  %v274 = vunpack.c.l.b16 %v74
  %v275 = vunpack.c.l.b16 %v75
  %v276 = vunpack.c.l.b16 %v76
  %v277 = vunpack.c.l.b16 %v77
  %v278 = vunpack.c.l.b16 %v78
  %v279 = vunpack.c.l.b16 %v79
  %v280 = vunpack.c.l.b16 %v80
  %v281 = vunpack.c.l.b16 %v81
  %v282 = vunpack.c.l.b16 %v82
  %v283 = vunpack.c.l.b16 %v83
  %v284 = vunpack.c.l.b16 %v84
  %v285 = vunpack.c.l.b16 %v85
  %v286 = vunpack.c.l.b16 %v86
  %v287 = vunpack.c.l.b16 %v87
  %v288 = vunpack.c.l.b16 %v88
  %v289 = vunpack.c.l.b16 %v89
  %v290 = vunpack.c.l.b16 %v90
  %v291 = vunpack.c.l.b16 %v91
  %v292 = vunpack.c.l.b16 %v92
  %v293 = vunpack.c.l.b16 %v93
  %v294 = vunpack.c.l.b16 %v94
  %v295 = vunpack.c.l.b16 %v95
  %v296 = vunpack.c.l.b16 %v96
  %v297 = vunpack.c.l.b16 %v97
  %v298 = vunpack.c.l.b16 %v98
  %v299 = vunpack.c.l.b16 %v99
  %v300 = vunpack.c.l.b16 %v100
  %v301 = vunpack.c.l.b16 %v101
  %v302 = vunpack.c.l.b16 %v102
  %v303 = vunpack.c.l.b16 %v103
  %v304 = vunpack.c.l.b16 %v104
  %v305 = vunpack.c.l.b16 %v105
  %v306 = vunpack.c.l.b16 %v106
  %v307 = vunpack.c.l.b16 %v107
  %v308 = vunpack.c.l.b16 %v108
  %v309 = vunpack.c.l.b16 %v109
  %v310 = vunpack.c.l.b16 %v110
  %v311 = vunpack.c.l.b16 %v111
  %v312 = vunpack.c.l.b16 %v112
  %v313 = vunpack.c.l.b16 %v113
  %v314 = vunpack.c.l.b16 %v114
  %v315 = vunpack.c.l.b16 %v115
  %v316 = vunpack.c.l.b16 %v116
  %v317 = vunpack.c.l.b16 %v117
  %v318 = vunpack.c.l.b16 %v118
  %v319 = vunpack.c.l.b16 %v119
  %v320 = vunpack.c.l.b16 %v120
  %v321 = vunpack.c.l.b16 %v121
  %v322 = vunpack.c.l.b16 %v122
  %v323 = vunpack.c.l.b16 %v123
  %v324 = vunpack.c.l.b16 %v124
  %v325 = vunpack.c.l.b16 %v125
  %v326 = vunpack.c.l.b16 %v126
  %v327 = vpack.c.b16 %v230, %v229
  %v328 = vpack.c.b16 %v232, %v231
  %v329 = vpack.c.b16 %v234, %v233
  %v330 = vpack.c.b16 %v236, %v235
  %v331 = vpack.c.b16 %v238, %v237
  %v332 = vpack.c.b16 %v240, %v239
  %v333 = vpack.c.b16 %v242, %v241
  %v334 = vpack.c.b16 %v244, %v243
  %v335 = vpack.c.b16 %v246, %v245
  %v336 = vpack.c.b16 %v248, %v247
  %v337 = vpack.c.b16 %v250, %v249
  %v338 = vpack.c.b16 %v252, %v251
  %v339 = vpack.c.b16 %v254, %v253
  %v340 = vpack.c.b16 %v256, %v255
  %v341 = vpack.c.b16 %v258, %v257
  %v342 = vpack.c.b16 %v260, %v259
  %v343 = vpack.c.b16 %v262, %v261
  %v344 = vpack.c.b16 %v264, %v263
  %v345 = vpack.c.b16 %v266, %v265
  %v346 = vpack.c.b16 %v268, %v267
  %v347 = vpack.c.b16 %v270, %v269
  %v348 = vpack.c.b16 %v272, %v271
  %v349 = vpack.c.b16 %v274, %v273
  %v350 = vpack.c.b16 %v276, %v275
  %v351 = vpack.c.b16 %v278, %v277
  %v352 = vpack.c.b16 %v280, %v279
  %v353 = vpack.c.b16 %v282, %v281
  %v354 = vpack.c.b16 %v284, %v283
  %v355 = vpack.c.b16 %v286, %v285
  %v356 = vpack.c.b16 %v288, %v287
  %v357 = vpack.c.b16 %v290, %v289
  %v358 = vpack.c.b16 %v292, %v291
  %v359 = vpack.c.b16 %v294, %v293
  %v360 = vpack.c.b16 %v296, %v295
  %v361 = vpack.c.b16 %v298, %v297
  %v362 = vpack.c.b16 %v300, %v299
  %v363 = vpack.c.b16 %v302, %v301
  %v364 = vpack.c.b16 %v304, %v303
  %v365 = vpack.c.b16 %v306, %v305
  %v366 = vpack.c.b16 %v308, %v307
  %v367 = vpack.c.b16 %v310, %v309
  %v368 = vpack.c.b16 %v312, %v311
  %v369 = vpack.c.b16 %v314, %v313
  %v370 = vpack.c.b16 %v316, %v315
  %v371 = vpack.c.b16 %v318, %v317
  %v372 = vpack.c.b16 %v320, %v319
  %v373 = vpack.c.b16 %v322, %v321
  %v374 = vpack.c.b16 %v324, %v323
  %v375 = vpack.c.b16 %v326, %v325
  %vm425 = vcmask 130048
  %v427 = vsel %vm425, %v28, 0
  %429 = vmatpush.bf16.msra.mxu0 %v334
  %430 = vmatpush.bf16.msra.mxu0 %v333
  %431 = vmatpush.bf16.msra.mxu0 %v332
  %432 = vmatpush.bf16.msra.mxu0 %v331
  %433 = vmatpush.bf16.msra.mxu0 %v330
  %434 = vmatpush.bf16.msra.mxu0 %v329
  %435 = vmatpush.bf16.msra.mxu0 %v328
  %436 = vmatpush.bf16.msra.mxu0 %v327
  %437 = vmatmul.bf16.gmra.mxu0 %v22
  %v438 = vpop.f32.mrf.mxu0
  %v439 = vadd.f32 %v129, %v438
  %v440 = vpop.f32.mrf.mxu0
  %441 = vdwg.mxu0
  %442 = vmatpush.bf16.msra.mxu0 %v342
  %443 = vmatpush.bf16.msra.mxu0 %v341
  %444 = vmatpush.bf16.msra.mxu0 %v340
  %445 = vmatpush.bf16.msra.mxu0 %v339
  %446 = vmatpush.bf16.msra.mxu0 %v338
  %447 = vmatpush.bf16.msra.mxu0 %v337
  %448 = vmatpush.bf16.msra.mxu0 %v336
  %449 = vmatpush.bf16.msra.mxu0 %v335
  %450 = vmatmul.bf16.gmra.mxu0 %v23
  %v451 = vpop.f32.mrf.mxu0
  %v452 = vadd.f32 %v439, %v451
  %v453 = vpop.f32.mrf.mxu0
  %454 = vdwg.mxu0
  %455 = vmatpush.bf16.msra.mxu0 %v350
  %456 = vmatpush.bf16.msra.mxu0 %v349
  %457 = vmatpush.bf16.msra.mxu0 %v348
  %458 = vmatpush.bf16.msra.mxu0 %v347
  %459 = vmatpush.bf16.msra.mxu0 %v346
  %460 = vmatpush.bf16.msra.mxu0 %v345
  %461 = vmatpush.bf16.msra.mxu0 %v344
  %462 = vmatpush.bf16.msra.mxu0 %v343
  %463 = vmatmul.bf16.gmra.mxu0 %v24
  %v464 = vpop.f32.mrf.mxu0
  %v465 = vadd.f32 %v452, %v464
  %v466 = vpop.f32.mrf.mxu0
  %467 = vdwg.mxu0
  %468 = vmatpush.bf16.msra.mxu0 %v358
  %469 = vmatpush.bf16.msra.mxu0 %v357
  %470 = vmatpush.bf16.msra.mxu0 %v356
  %471 = vmatpush.bf16.msra.mxu0 %v355
  %472 = vmatpush.bf16.msra.mxu0 %v354
  %473 = vmatpush.bf16.msra.mxu0 %v353
  %474 = vmatpush.bf16.msra.mxu0 %v352
  %475 = vmatpush.bf16.msra.mxu0 %v351
  %476 = vmatmul.bf16.gmra.mxu0 %v25
  %v477 = vpop.f32.mrf.mxu0
  %v478 = vadd.f32 %v465, %v477
  %v479 = vpop.f32.mrf.mxu0
  %480 = vdwg.mxu0
  %481 = vmatpush.bf16.msra.mxu0 %v366
  %482 = vmatpush.bf16.msra.mxu0 %v365
  %483 = vmatpush.bf16.msra.mxu0 %v364
  %484 = vmatpush.bf16.msra.mxu0 %v363
  %485 = vmatpush.bf16.msra.mxu0 %v362
  %486 = vmatpush.bf16.msra.mxu0 %v361
  %487 = vmatpush.bf16.msra.mxu0 %v360
  %488 = vmatpush.bf16.msra.mxu0 %v359
  %489 = vmatmul.bf16.gmra.mxu0 %v26
  %v490 = vpop.f32.mrf.mxu0
  %v491 = vadd.f32 %v478, %v490
  %v492 = vpop.f32.mrf.mxu0
  %493 = vdwg.mxu0
  %494 = vmatpush.bf16.msra.mxu0 %v374
  %495 = vmatpush.bf16.msra.mxu0 %v373
  %496 = vmatpush.bf16.msra.mxu0 %v372
  %497 = vmatpush.bf16.msra.mxu0 %v371
  %498 = vmatpush.bf16.msra.mxu0 %v370
  %499 = vmatpush.bf16.msra.mxu0 %v369
  %500 = vmatpush.bf16.msra.mxu0 %v368
  %501 = vmatpush.bf16.msra.mxu0 %v367
  %502 = vmatmul.bf16.gmra.mxu0 %v27
  %v503 = vpop.f32.mrf.mxu0
  %v504 = vadd.f32 %v491, %v503
  %v505 = vpop.f32.mrf.mxu0
  %506 = vdwg.mxu0
  %507 = vmatpush.bf16.msra.mxu0 0
  %508 = vmatpush.bf16.msra.mxu0 0
  %509 = vmatpush.bf16.msra.mxu0 0
  %510 = vmatpush.bf16.msra.mxu0 0
  %511 = vmatpush.bf16.msra.mxu0 0
  %512 = vmatpush.bf16.msra.mxu0 0
  %513 = vmatpush.bf16.msra.mxu0 0
  %514 = vmatpush.bf16.msra.mxu0 %v375
  %515 = vmatmul.bf16.gmra.mxu0 %v427
  %v516 = vpop.f32.mrf.mxu0
  %v517 = vadd.f32 %v504, %v516
  %v518 = vpop.f32.mrf.mxu0
  %519 = vdwg.mxu0
  %v520 = vlaneseq
  %v521 = vand.u32 %v520, 127
  %vm522 = vcmp.lt.s32.totalorder %v521, 10
  %v523 = vsel %vm522, %v517, -inf
  %524 = vmax.xlane.f32.xlu0 %v523
  %v525 = vpop.xlane.xlu0 %524
  %v526 = vsub.f32 %v523, %v525
  %v527 = vmul.f32 %v526, 1.442695
  %v528 = vpow.pop %v527
  %529 = vadd.xlane.f32.xlu0 %v528
  %v530 = vpop.xlane.xlu0 %529
  %v531 = vlog2.pop %v530
  %v532 = vmul.f32 %v531, 0.6931472
  %v533 = vsub.f32 %v526, %v532
  %v534 = vpack.c.bf16 %v533, %v533
  %535 = vst [vmem:[%s3] sm:$0xf] %v534
  // Predicated region
  $region14: #{softmaxnet_forward.1} parent=0 // pred_check
    _
  $region15: #{softmaxnet_forward.1} parent=0 // pred_check_branch
    %537 = sbr.rel (0) target = $region17
  $region16: #{softmaxnet_forward.1} parent=0 // pred_region
    _
  $region17: #{softmaxnet_forward.1} parent=0 // pred_fallthru
    _
  // Predicated region
  $region18: #{softmaxnet_forward.1} parent=0 // pred_check
    _
  $region19: #{softmaxnet_forward.1} parent=0 // pred_check_branch
    %539 = sbr.rel (0) target = $region21
  $region20: #{softmaxnet_forward.1} parent=0 // pred_region
    _
  $region21: #{softmaxnet_forward.1} parent=0 // pred_fallthru
    _

</llo_original>
